<compile_context>
chip_gen: v5e
topology: v5e:2x2
jax: 0.10.0
libtpu: 0.0.40
codegen_flags: <defaults>
</compile_context>

<pallas_src>
import math

import jax
import jax.numpy as jnp
from jax.experimental import pallas as pl
from jax.experimental.pallas import tpu as pltpu


# ---------------------------------------------------------------------------
# Small helpers
# ---------------------------------------------------------------------------
def _round_up(x, m):
    return ((x + m - 1) // m) * m


def _pad_to(x, shape):
    pads = [(0, s - d) for d, s in zip(x.shape, shape)]
    if all(p == (0, 0) for p in pads):
        return x
    return jnp.pad(x, pads)


def _nbytes(shape, dtype):
    return math.prod(shape) * jnp.dtype(dtype).itemsize


def _vmem_limit(block_bytes):
    # Scoped-VMEM request sized to resident weights + (double-buffered) streamed
    # blocks with headroom; capped at 64 MiB so the request is valid on v7x.
    return int(min(max(2 * block_bytes + (4 << 20), 16 << 20), 64 << 20))


def _sigmoid(x):
    # sigmoid(x) == 0.5*(tanh(x/2)+1): one EUP transcendental, no f32 divide on VALU.
    return 0.5 * jnp.tanh(0.5 * x) + 0.5


# ---------------------------------------------------------------------------
# Parameter init (matches torch.nn.Linear defaults) + fused/packed layout
# ---------------------------------------------------------------------------
def init_params(key, input_size, output_size):
    """Per-gate (W, b) with nn.Linear's U(-1/sqrt(in_f), 1/sqrt(in_f)) init."""
    in_f = input_size + output_size
    bound = 1.0 / math.sqrt(in_f)
    keys = jax.random.split(key, 8)
    ws = [jax.random.uniform(keys[2 * g], (output_size, in_f), jnp.float32,
                             -bound, bound) for g in range(4)]
    bs = [jax.random.uniform(keys[2 * g + 1], (output_size,), jnp.float32,
                             -bound, bound) for g in range(4)]
    return ws, bs


def _gate_interleave(gate_arrays, tile_o):
    """Pack four per-gate arrays (..., o_pad) into (..., 4*o_pad) with columns
    ordered [O-tile0: g1 g2 g3 g4 | O-tile1: g1 g2 g3 g4 | ...] so every
    4*tile_o column block carries all four gates of one lane-dense O slice."""
    o_pad = gate_arrays[0].shape[-1]
    n_tiles = o_pad // tile_o
    lead = gate_arrays[0].shape[:-1]
    parts = [g.reshape(lead + (n_tiles, tile_o)) for g in gate_arrays]
    stacked = jnp.stack(parts, axis=-2)               # (..., n_tiles, 4, tile_o)
    return stacked.reshape(lead + (4 * o_pad,))


def pack_params(ws, bs, input_size, output_size, *, tile_o=128,
                compute_dtype=jnp.bfloat16):
    """Pad O to a multiple of tile_o (lane-dense gate slices/stores), split the
    fused weight into input/recurrent halves, gate-interleave the columns and
    cast the matmul weights to the MXU compute dtype (bf16 by default)."""
    o_pad = _round_up(output_size, tile_o)
    wi_g, wh_g, b_g = [], [], []
    for w, b in zip(ws, bs):
        wt = jnp.pad(w.T, ((0, 0), (0, o_pad - output_size)))    # (in_f, o_pad)
        wi_g.append(wt[:input_size])                              # (I, o_pad)
        wh_g.append(jnp.pad(wt[input_size:],
                            ((0, o_pad - output_size), (0, 0))))  # (o_pad, o_pad)
        b_g.append(jnp.pad(b, (0, o_pad - output_size)))          # (o_pad,)
    w_i = _gate_interleave(wi_g, tile_o).astype(compute_dtype)        # (I, 4*o_pad)
    w_h = _gate_interleave(wh_g, tile_o).astype(compute_dtype)        # (o_pad, 4*o_pad)
    bias = _gate_interleave(b_g, tile_o)[None, :].astype(jnp.float32)  # (1, 4*o_pad)
    return dict(w_i=w_i, w_h=w_h, b=bias, input_size=input_size,
                output_size=output_size, o_pad=o_pad, tile_o=tile_o)


# ---------------------------------------------------------------------------
# Single-step cell kernel (== Lstm.forward), gridded over gate-interleaved O tiles
# ---------------------------------------------------------------------------
def _make_cell_kernel(tile_o):
    def kernel(x_ref, h_ref, c_ref, wi_ref, wh_ref, b_ref, h_out, c_out):
        # Fused 4-gate pre-activation for one O tile: (B, 4*tile_o), f32 acc.
        z = (jnp.dot(x_ref[...].astype(wi_ref.dtype), wi_ref[...],
                     preferred_element_type=jnp.float32)
             + jnp.dot(h_ref[...].astype(wh_ref.dtype), wh_ref[...],
                       preferred_element_type=jnp.float32)
             + b_ref[...])
        c = c_ref[...]
        o1 = _sigmoid(z[:, 0 * tile_o:1 * tile_o])
        o2 = _sigmoid(z[:, 1 * tile_o:2 * tile_o])
        o3 = jnp.tanh(z[:, 2 * tile_o:3 * tile_o])
        o4 = _sigmoid(z[:, 3 * tile_o:4 * tile_o])
        c_out[...] = (c * o1 + o2 * o3).astype(c_out.dtype)
        h_out[...] = (jnp.tanh(c) * o4).astype(h_out.dtype)  # OLD c, as in PyTorch
    return kernel


def lstm_cell(i, h, c, params):
    """One LSTM-cell step (== Lstm.forward). params from pack_params()."""
    B, O = c.shape
    I = params["input_size"]
    o_pad, tile_o = params["o_pad"], params["tile_o"]
    n_tiles = o_pad // tile_o
    b_pad = _round_up(B, 8)

    x_p = _pad_to(i, (b_pad, I))
    h_p = _pad_to(h, (b_pad, o_pad))
    c_p = _pad_to(c, (b_pad, o_pad))
    w_i, w_h, bias = params["w_i"], params["w_h"], params["b"]

    block_bytes = (
        _nbytes((b_pad, I), jnp.float32) + 2 * _nbytes((b_pad, o_pad), jnp.float32)
        + _nbytes((I, 4 * tile_o), w_i.dtype) + _nbytes((o_pad, 4 * tile_o), w_h.dtype)
        + _nbytes((1, 4 * tile_o), jnp.float32)
        + 2 * _nbytes((b_pad, tile_o), jnp.float32))

    h_out, c_out = pl.pallas_call(
        _make_cell_kernel(tile_o),
        out_shape=(jax.ShapeDtypeStruct((b_pad, o_pad), jnp.float32),
                   jax.ShapeDtypeStruct((b_pad, o_pad), jnp.float32)),
        grid=(n_tiles,),
        in_specs=[
            # x, h: resident across all O tiles -> single buffer.
            pl.BlockSpec((b_pad, I), lambda j: (0, 0), pipeline_mode=pl.Buffered(1)),
            pl.BlockSpec((b_pad, o_pad), lambda j: (0, 0), pipeline_mode=pl.Buffered(1)),
            # Per-tile blocks (streamed, default double-buffering).
            pl.BlockSpec((b_pad, tile_o), lambda j: (0, j)),       # c tile
            pl.BlockSpec((I, 4 * tile_o), lambda j: (0, j)),       # W_i gate-tile
            pl.BlockSpec((o_pad, 4 * tile_o), lambda j: (0, j)),   # W_h gate-tile
            pl.BlockSpec((1, 4 * tile_o), lambda j: (0, j)),       # bias gate-tile
        ],
        out_specs=(pl.BlockSpec((b_pad, tile_o), lambda j: (0, j)),
                   pl.BlockSpec((b_pad, tile_o), lambda j: (0, j))),
        compiler_params=pltpu.CompilerParams(
            dimension_semantics=("parallel",),
            vmem_limit_bytes=_vmem_limit(block_bytes)),
    )(x_p, h_p, c_p, w_i, w_h, bias)
    return h_out[:B, :O], c_out[:B, :O]


# ---------------------------------------------------------------------------
# Hoisted input projection: z_x = x2d @ W_i + b as one large batched matmul
# ---------------------------------------------------------------------------
def _proj_kernel(x_ref, w_ref, b_ref, z_ref):
    z_ref[...] = (jnp.dot(x_ref[...].astype(w_ref.dtype), w_ref[...],
                          preferred_element_type=jnp.float32)
                  + b_ref[...]).astype(z_ref.dtype)


def _input_projection(x2d, w_i, bias, row_tile):
    tb, i_dim = x2d.shape
    four_o = w_i.shape[1]
    block_bytes = (2 * (_nbytes((row_tile, i_dim), x2d.dtype)
                        + _nbytes((row_tile, four_o), jnp.float32))
                   + _nbytes(w_i.shape, w_i.dtype)
                   + _nbytes(bias.shape, jnp.float32))
    return pl.pallas_call(
        _proj_kernel,
        out_shape=jax.ShapeDtypeStruct((tb, four_o), jnp.float32),
        grid=(pl.cdiv(tb, row_tile),),
        in_specs=[
            pl.BlockSpec((row_tile, i_dim), lambda r: (r, 0)),
            pl.BlockSpec(w_i.shape, lambda r: (0, 0), pipeline_mode=pl.Buffered(1)),
            pl.BlockSpec(bias.shape, lambda r: (0, 0), pipeline_mode=pl.Buffered(1)),
        ],
        out_specs=pl.BlockSpec((row_tile, four_o), lambda r: (r, 0)),
        compiler_params=pltpu.CompilerParams(
            dimension_semantics=("parallel",),
            vmem_limit_bytes=_vmem_limit(block_bytes)),
    )(x2d, w_i, bias)


# ---------------------------------------------------------------------------
# Sequence recurrence (== the loop in Lstm.evaluate / Lstm.train, forward only):
# only h @ W_h per step; W_h + h/c state stay resident in VMEM across all steps.
# ---------------------------------------------------------------------------
def _make_seq_kernel(tile_o, t_chunk):
    def kernel(zx_ref, h0_ref, c0_ref, wh_ref, h_out, c_out, h_sc, c_sc):
        @pl.when(pl.program_id(0) == 0)
        def _():
            h_sc[...] = h0_ref[...]
            c_sc[...] = c0_ref[...]

        # Short, fixed inner loop over the time chunk (unrolled): amortises the
        # per-grid-step overhead and keeps the recurrence serial only where it
        # must be.
        for s in range(t_chunk):
            z = zx_ref[s] + jnp.dot(h_sc[...].astype(wh_ref.dtype), wh_ref[...],
                                    preferred_element_type=jnp.float32)
            c_prev = c_sc[...]
            n_tiles = c_prev.shape[1] // tile_o
            for j in range(n_tiles):  # per-O-tile gate fusion: few live vregs/tile
                zt = z[:, j * 4 * tile_o:(j + 1) * 4 * tile_o]
                ct = c_prev[:, j * tile_o:(j + 1) * tile_o]
                o1 = _sigmoid(zt[:, 0 * tile_o:1 * tile_o])
                o2 = _sigmoid(zt[:, 1 * tile_o:2 * tile_o])
                o3 = jnp.tanh(zt[:, 2 * tile_o:3 * tile_o])
                o4 = _sigmoid(zt[:, 3 * tile_o:4 * tile_o])
                c_sc[:, j * tile_o:(j + 1) * tile_o] = ct * o1 + o2 * o3
                h_sc[:, j * tile_o:(j + 1) * tile_o] = jnp.tanh(ct) * o4  # OLD c

        @pl.when(pl.program_id(0) == pl.num_programs(0) - 1)
        def _():
            h_out[...] = h_sc[...].astype(h_out.dtype)
            c_out[...] = c_sc[...].astype(c_out.dtype)
    return kernel


def lstm_sequence(x, h0, c0, params):
    """Run the cell over x: (T, B, I) with initial state (h0, c0)."""
    T, B, I = x.shape
    O = c0.shape[1]
    o_pad, tile_o = params["o_pad"], params["tile_o"]
    b_pad = _round_up(B, 8)

    x_p = _pad_to(x, (T, b_pad, I))
    h0_p = _pad_to(h0, (b_pad, o_pad))
    c0_p = _pad_to(c0, (b_pad, o_pad))
    w_h, bias = params["w_h"], params["b"]

    # Hoisted input projection: one (T*B, I) x (I, 4*Op) matmul with the bias
    # folded in; removes x@W_i + bias-add from the serial recurrence and halves
    # the weights the recurrent kernel keeps resident.
    tb = T * b_pad
    row_tile = tb if tb <= 512 else 512
    zx = _input_projection(x_p.reshape(tb, I), params["w_i"], bias, row_tile)
    zx = zx.reshape(T, b_pad, 4 * o_pad)

    # Time chunking: several cell updates per grid step.
    t_chunk = next(d for d in (8, 4, 2, 1) if T % d == 0)

    block_bytes = (2 * _nbytes((t_chunk, b_pad, 4 * o_pad), jnp.float32)  # z_x stream
                   + _nbytes(w_h.shape, w_h.dtype)                        # resident W_h
                   + 6 * _nbytes((b_pad, o_pad), jnp.float32))            # state/outs

    h_out, c_out = pl.pallas_call(
        _make_seq_kernel(tile_o, t_chunk),
        out_shape=(jax.ShapeDtypeStruct((b_pad, o_pad), jnp.float32),
                   jax.ShapeDtypeStruct((b_pad, o_pad), jnp.float32)),
        grid=(T // t_chunk,),
        in_specs=[
            pl.BlockSpec((t_chunk, b_pad, 4 * o_pad), lambda t: (t, 0, 0)),  # z_x
            pl.BlockSpec((b_pad, o_pad), lambda t: (0, 0), pipeline_mode=pl.Buffered(1)),
            pl.BlockSpec((b_pad, o_pad), lambda t: (0, 0), pipeline_mode=pl.Buffered(1)),
            pl.BlockSpec((o_pad, 4 * o_pad), lambda t: (0, 0), pipeline_mode=pl.Buffered(1)),
        ],
        out_specs=(pl.BlockSpec((b_pad, o_pad), lambda t: (0, 0)),
                   pl.BlockSpec((b_pad, o_pad), lambda t: (0, 0))),
        scratch_shapes=[pltpu.VMEM((b_pad, o_pad), jnp.float32),   # h state
                        pltpu.VMEM((b_pad, o_pad), jnp.float32)],  # c state
        compiler_params=pltpu.CompilerParams(
            dimension_semantics=("arbitrary",),
            vmem_limit_bytes=_vmem_limit(block_bytes)),
    )(zx, h0_p, c0_p, w_h)
    return h_out[:B, :O], c_out[:B, :O]


# ---------------------------------------------------------------------------
# Pure-JAX references (mirror the PyTorch forward exactly)
# ---------------------------------------------------------------------------
def lstm_cell_ref(i, h, c, ws, bs):
    ih = jnp.concatenate([i, h], axis=1)
    o1 = jax.nn.sigmoid(ih @ ws[0].T + bs[0])
    o2 = jax.nn.sigmoid(ih @ ws[1].T + bs[1])
    o3 = jnp.tanh(ih @ ws[2].T + bs[2])
    o4 = jax.nn.sigmoid(ih @ ws[3].T + bs[3])
    new_c = c * o1 + o2 * o3
    new_h = jnp.tanh(c) * o4
    return new_h, new_c


def lstm_sequence_ref(x, h0, c0, ws, bs):
    def step(carry, x_t):
        h, c = lstm_cell_ref(x_t, carry[0], carry[1], ws, bs)
        return (h, c), None
    (h, c), _ = jax.lax.scan(step, (h0, c0), x)
    return h, c


if __name__ == "__main__":
    B = 8
    INPUT_SIZE = 16
    OUTPUT_SIZE = 32
    SEQ_LEN = 8

    key = jax.random.PRNGKey(0)
    k_i, k_h, k_c, k_p, k_x = jax.random.split(key, 5)

    i = jax.random.normal(k_i, (B, INPUT_SIZE), jnp.float32)
    h = jax.random.normal(k_h, (B, OUTPUT_SIZE), jnp.float32)
    c = jax.random.normal(k_c, (B, OUTPUT_SIZE), jnp.float32)
    x_seq = jax.random.normal(k_x, (SEQ_LEN, B, INPUT_SIZE), jnp.float32)
    h0 = jnp.zeros((B, OUTPUT_SIZE), jnp.float32)
    c0 = jnp.zeros((B, OUTPUT_SIZE), jnp.float32)

    ws, bs = init_params(k_p, INPUT_SIZE, OUTPUT_SIZE)
    ref_h, ref_c = lstm_cell_ref(i, h, c, ws, bs)
    rseq_h, rseq_c = lstm_sequence_ref(x_seq, h0, c0, ws, bs)

    # --- f32 weights: bit-accurate structural check -------------------------
    p32 = pack_params(ws, bs, INPUT_SIZE, OUTPUT_SIZE, compute_dtype=jnp.float32)
    nh, nc = lstm_cell(i, h, c, p32)
    jax.block_until_ready((nh, nc))
    assert jnp.allclose(nh, ref_h, atol=1e-5, rtol=1e-5)
    assert jnp.allclose(nc, ref_c, atol=1e-5, rtol=1e-5)

    sh, sc = lstm_sequence(x_seq, h0, c0, p32)
    jax.block_until_ready((sh, sc))
    assert jnp.allclose(sh, rseq_h, atol=1e-4, rtol=1e-4)
    assert jnp.allclose(sc, rseq_c, atol=1e-4, rtol=1e-4)

    # --- bf16 weights (the performance path): f32 accumulation --------------
    pbf = pack_params(ws, bs, INPUT_SIZE, OUTPUT_SIZE, compute_dtype=jnp.bfloat16)
    nh_bf, nc_bf = lstm_cell(i, h, c, pbf)
    sh_bf, sc_bf = lstm_sequence(x_seq, h0, c0, pbf)
    jax.block_until_ready((nh_bf, nc_bf, sh_bf, sc_bf))
    assert jnp.allclose(nh_bf, ref_h, atol=3e-2, rtol=3e-2)
    assert jnp.allclose(nc_bf, ref_c, atol=3e-2, rtol=3e-2)
    assert jnp.allclose(sh_bf, rseq_h, atol=3e-2, rtol=3e-2)
    assert jnp.allclose(sc_bf, rseq_c, atol=3e-2, rtol=3e-2)

    print("KERNEL_OK")
</pallas_src>

<mosaic_0001>
module attributes {stable_mosaic.version = 11 : i64} {
  func.func @kernel(%arg0: i32, %arg1: memref<8x16xf32, #tpu.memory_space<vmem>>, %arg2: memref<8x128xf32, #tpu.memory_space<vmem>>, %arg3: memref<8x128xf32, #tpu.memory_space<vmem>>, %arg4: memref<16x512xf32, #tpu.memory_space<vmem>>, %arg5: memref<128x512xf32, #tpu.memory_space<vmem>>, %arg6: memref<1x512xf32, #tpu.memory_space<vmem>>, %arg7: memref<8x128xf32, #tpu.memory_space<vmem>>, %arg8: memref<8x128xf32, #tpu.memory_space<vmem>>) attributes {dimension_semantics = [#tpu.dimension_semantics<parallel>], iteration_bounds = array<i64: 1>, scalar_prefetch = 0 : i64, scratch_operands = 0 : i64, tpu.core_type = #tpu.core_type<tc>, window_params = [{pipeline_mode = #tpu.pipeline_mode<synchronous>, transform_indices = @transform_0, window_bounds = array<i64: 8, 16>}, {pipeline_mode = #tpu.pipeline_mode<synchronous>, transform_indices = @transform_1, window_bounds = array<i64: 8, 128>}, {transform_indices = @transform_2, window_bounds = array<i64: 8, 128>}, {transform_indices = @transform_3, window_bounds = array<i64: 16, 512>}, {transform_indices = @transform_4, window_bounds = array<i64: 128, 512>}, {transform_indices = @transform_5, window_bounds = array<i64: 1, 512>}, {transform_indices = @transform_6, window_bounds = array<i64: 8, 128>}, {transform_indices = @transform_7, window_bounds = array<i64: 8, 128>}]} {
    %c0 = arith.constant 0 : index
    %c0_0 = arith.constant 0 : index
    %0 = vector.load %arg1[%c0, %c0_0] : memref<8x16xf32, #tpu.memory_space<vmem>>, vector<8x16xf32>
    %c0_1 = arith.constant 0 : index
    %c0_2 = arith.constant 0 : index
    %1 = vector.load %arg4[%c0_1, %c0_2] : memref<16x512xf32, #tpu.memory_space<vmem>>, vector<16x512xf32>
    %cst = arith.constant dense<0.000000e+00> : vector<8x512xf32>
    %2 = tpu.matmul %0, %1, %cst {dimension_numbers = #tpu.dot_dimension_numbers<[1], [0], [0], [1], [0, 0, 1, 1], [], []>} : vector<8x16xf32>, vector<16x512xf32>, vector<8x512xf32> -> vector<8x512xf32>
    %c0_3 = arith.constant 0 : index
    %c0_4 = arith.constant 0 : index
    %3 = vector.load %arg2[%c0_3, %c0_4] : memref<8x128xf32, #tpu.memory_space<vmem>>, vector<8x128xf32>
    %c0_5 = arith.constant 0 : index
    %c0_6 = arith.constant 0 : index
    %4 = vector.load %arg5[%c0_5, %c0_6] : memref<128x512xf32, #tpu.memory_space<vmem>>, vector<128x512xf32>
    %cst_7 = arith.constant dense<0.000000e+00> : vector<8x512xf32>
    %5 = tpu.matmul %3, %4, %cst_7 {dimension_numbers = #tpu.dot_dimension_numbers<[1], [0], [0], [1], [0, 0, 1, 1], [], []>} : vector<8x128xf32>, vector<128x512xf32>, vector<8x512xf32> -> vector<8x512xf32>
    %6 = arith.addf %2, %5 : vector<8x512xf32>
    %c0_8 = arith.constant 0 : index
    %c0_9 = arith.constant 0 : index
    %7 = vector.load %arg6[%c0_8, %c0_9] : memref<1x512xf32, #tpu.memory_space<vmem>>, vector<1x512xf32>
    %8 = vector.broadcast %7 : vector<1x512xf32> to vector<8x512xf32>
    %9 = arith.addf %6, %8 : vector<8x512xf32>
    %c0_10 = arith.constant 0 : index
    %c0_11 = arith.constant 0 : index
    %10 = vector.load %arg3[%c0_10, %c0_11] : memref<8x128xf32, #tpu.memory_space<vmem>>, vector<8x128xf32>
    %11 = vector.extract_strided_slice %9 {offsets = [0, 0], sizes = [8, 128], strides = [1, 1]} : vector<8x512xf32> to vector<8x128xf32>
    %cst_12 = arith.constant 5.000000e-01 : f32
    %12 = vector.broadcast %cst_12 : f32 to vector<8x128xf32>
    %13 = arith.mulf %12, %11 : vector<8x128xf32>
    %14 = math.tanh %13 : vector<8x128xf32>
    %cst_13 = arith.constant 5.000000e-01 : f32
    %15 = vector.broadcast %cst_13 : f32 to vector<8x128xf32>
    %16 = arith.mulf %15, %14 : vector<8x128xf32>
    %cst_14 = arith.constant 5.000000e-01 : f32
    %17 = vector.broadcast %cst_14 : f32 to vector<8x128xf32>
    %18 = arith.addf %16, %17 : vector<8x128xf32>
    %19 = vector.extract_strided_slice %9 {offsets = [0, 128], sizes = [8, 128], strides = [1, 1]} : vector<8x512xf32> to vector<8x128xf32>
    %cst_15 = arith.constant 5.000000e-01 : f32
    %20 = vector.broadcast %cst_15 : f32 to vector<8x128xf32>
    %21 = arith.mulf %20, %19 : vector<8x128xf32>
    %22 = math.tanh %21 : vector<8x128xf32>
    %cst_16 = arith.constant 5.000000e-01 : f32
    %23 = vector.broadcast %cst_16 : f32 to vector<8x128xf32>
    %24 = arith.mulf %23, %22 : vector<8x128xf32>
    %cst_17 = arith.constant 5.000000e-01 : f32
    %25 = vector.broadcast %cst_17 : f32 to vector<8x128xf32>
    %26 = arith.addf %24, %25 : vector<8x128xf32>
    %27 = vector.extract_strided_slice %9 {offsets = [0, 256], sizes = [8, 128], strides = [1, 1]} : vector<8x512xf32> to vector<8x128xf32>
    %28 = math.tanh %27 : vector<8x128xf32>
    %29 = vector.extract_strided_slice %9 {offsets = [0, 384], sizes = [8, 128], strides = [1, 1]} : vector<8x512xf32> to vector<8x128xf32>
    %cst_18 = arith.constant 5.000000e-01 : f32
    %30 = vector.broadcast %cst_18 : f32 to vector<8x128xf32>
    %31 = arith.mulf %30, %29 : vector<8x128xf32>
    %32 = math.tanh %31 : vector<8x128xf32>
    %cst_19 = arith.constant 5.000000e-01 : f32
    %33 = vector.broadcast %cst_19 : f32 to vector<8x128xf32>
    %34 = arith.mulf %33, %32 : vector<8x128xf32>
    %cst_20 = arith.constant 5.000000e-01 : f32
    %35 = vector.broadcast %cst_20 : f32 to vector<8x128xf32>
    %36 = arith.addf %34, %35 : vector<8x128xf32>
    %37 = arith.mulf %10, %18 : vector<8x128xf32>
    %38 = arith.mulf %26, %28 : vector<8x128xf32>
    %39 = arith.addf %37, %38 : vector<8x128xf32>
    %c0_21 = arith.constant 0 : index
    %c0_22 = arith.constant 0 : index
    %40 = vector.load %arg8[%c0_21, %c0_22] : memref<8x128xf32, #tpu.memory_space<vmem>>, vector<8x128xf32>
    tpu.vector_store %arg8[%c0_21, %c0_22], %39 {strides = array<i32>} : memref<8x128xf32, #tpu.memory_space<vmem>>, vector<8x128xf32>,
    %41 = math.tanh %10 : vector<8x128xf32>
    %42 = arith.mulf %41, %36 : vector<8x128xf32>
    %c0_23 = arith.constant 0 : index
    %c0_24 = arith.constant 0 : index
    %43 = vector.load %arg7[%c0_23, %c0_24] : memref<8x128xf32, #tpu.memory_space<vmem>>, vector<8x128xf32>
    tpu.vector_store %arg7[%c0_23, %c0_24], %42 {strides = array<i32>} : memref<8x128xf32, #tpu.memory_space<vmem>>, vector<8x128xf32>,
    return
  }
  func.func @transform_0(%arg0: i32) -> (i32, i32) {
    %c0_i32 = arith.constant 0 : i32
    %c0_i32_0 = arith.constant 0 : i32
    %c0_i32_1 = arith.constant 0 : i32
    return %c0_i32, %c0_i32_0 : i32, i32
  }
  func.func @transform_1(%arg0: i32) -> (i32, i32) {
    %c0_i32 = arith.constant 0 : i32
    %c0_i32_0 = arith.constant 0 : i32
    %c0_i32_1 = arith.constant 0 : i32
    return %c0_i32, %c0_i32_0 : i32, i32
  }
  func.func @transform_2(%arg0: i32) -> (i32, i32) {
    %c0_i32 = arith.constant 0 : i32
    %c0_i32_0 = arith.constant 0 : i32
    return %c0_i32, %arg0 : i32, i32
  }
  func.func @transform_3(%arg0: i32) -> (i32, i32) {
    %c0_i32 = arith.constant 0 : i32
    %c0_i32_0 = arith.constant 0 : i32
    return %c0_i32, %arg0 : i32, i32
  }
  func.func @transform_4(%arg0: i32) -> (i32, i32) {
    %c0_i32 = arith.constant 0 : i32
    %c0_i32_0 = arith.constant 0 : i32
    return %c0_i32, %arg0 : i32, i32
  }
  func.func @transform_5(%arg0: i32) -> (i32, i32) {
    %c0_i32 = arith.constant 0 : i32
    %c0_i32_0 = arith.constant 0 : i32
    return %c0_i32, %arg0 : i32, i32
  }
  func.func @transform_6(%arg0: i32) -> (i32, i32) {
    %c0_i32 = arith.constant 0 : i32
    %c0_i32_0 = arith.constant 0 : i32
    return %c0_i32, %arg0 : i32, i32
  }
  func.func @transform_7(%arg0: i32) -> (i32, i32) {
    %c0_i32 = arith.constant 0 : i32
    %c0_i32_0 = arith.constant 0 : i32
    return %c0_i32, %arg0 : i32, i32
  }
}

</mosaic_0001>

<llo_original>
// kernel: tpu_custom_call.1
$region0: #{tpu_custom_call.1}
  #allocation0 [shape = 'u32[]', space=smem, size = 0x4, offset = 0x4, fixed_abs, tag = 'smem constant byte address 0x4 - core index']
  #allocation1 [shape = 'u32[72,128]{1,0:T(1,128)}', space=vmem, size = 0x9000, scoped, tag = 'internal scratch']
  %s0 = inlined_call_operand.hbm [shape: f32[8,16], index: 0, kind: input, shape index: {}]
  %s1 = inlined_call_operand.hbm [shape: f32[8,128], index: 1, kind: input, shape index: {}]
  %s2 = inlined_call_operand.hbm [shape: f32[8,128], index: 2, kind: input, shape index: {}]
  %s3 = inlined_call_operand.hbm [shape: f32[16,512], index: 3, kind: input, shape index: {}]
  %s4 = inlined_call_operand.hbm [shape: f32[128,512], index: 4, kind: input, shape index: {}]
  %s5 = inlined_call_operand.vmem [shape: f32[1,512], index: 5, kind: input, shape index: {}]
  %s6 = inlined_call_operand.hbm [shape: f32[8,128], index: 6, kind: output, shape index: {0}]
  %s7 = inlined_call_operand.hbm [shape: f32[8,128], index: 7, kind: output, shape index: {1}]
  %8 = xla_tuple %s6, %s7
  %s9 = sld [smem:[#allocation0]]
  $region62: #{tpu_custom_call.1} parent=0
    _
  %s11 = ssub.s32 1, %s9
  %s12 = scalar_select 0, %s11, %s9
  $region1: #{tpu_custom_call.1} parent=0
    #allocation2 [shape = 'u8[4096]{0}', space=vmem, size = 0x1000, scoped, tag = 'input window, operand 0, single buffered']
    #allocation3 [shape = 's32[1]{0}', space=sflag, size = 0x4, scoped, tag = 'scoped memory for tpu_custom_call.1']
    #allocation4 [shape = 's32[1]{0}', space=sflag, size = 0x4, scoped, tag = 'scoped memory for tpu_custom_call.1']
    #allocation5 [shape = 'u8[4096]{0}', space=vmem, size = 0x1000, scoped, tag = 'input window, operand 1, single buffered']
    #allocation6 [shape = 's32[1]{0}', space=sflag, size = 0x4, scoped, tag = 'scoped memory for tpu_custom_call.1']
    #allocation7 [shape = 'u8[4096]{0}', space=vmem, size = 0x1000, scoped, tag = 'input window, operand 2, single buffered']
    #allocation8 [shape = 'u8[32768]{0}', space=vmem, size = 0x8000, scoped, tag = 'input window, operand 3, single buffered']
    #allocation9 [shape = 's32[1]{0}', space=sflag, size = 0x4, scoped, tag = 'scoped memory for tpu_custom_call.1']
    #allocation10 [shape = 'u8[262144]{0}', space=vmem, size = 0x40000, scoped, tag = 'input window, operand 4, single buffered']
    #allocation11 [shape = 'u8[4096]{0}', space=vmem, size = 0x1000, scoped, tag = 'output window, operand 0, single buffered']
    #allocation12 [shape = 'u8[4096]{0}', space=vmem, size = 0x1000, scoped, tag = 'output window, operand 1, single buffered']
    #allocation13 [shape = 's32[1]{0}', space=sflag, size = 0x4, scoped, tag = 'scoped memory for tpu_custom_call.1']
    %13 = vsyncpa [#allocation3], 0
    %14 = vsyncpa [#allocation6], 0
    %15 = vsyncpa [#allocation9], 0
    %16 = vsyncpa [#allocation4], 0
    %17 = vsyncpa [#allocation13], 0
    // Predicated region
    $region2: #{tpu_custom_call.1} parent=1 // pred_check
      _
    $region3: #{tpu_custom_call.1} parent=1 // pred_check_branch
      %19 = sbr.rel (0) target = $region5
    $region4: #{tpu_custom_call.1} parent=1 // pred_region
      %21 = vsyncadd [#allocation3], 0
      %s23 = sshll.u32 %s0, 4
      %s24 = int_to_ptr.hbm [resolvable:$true] %s23
      %s25 = sshll.u32 [#allocation2], 4
      %s26 = int_to_ptr.vmem [resolvable:$true] %s25
      %28 = dma.hbm_to_vmem [thread:$0]  %s24, 128, %s26, [#allocation3]
    $region5: #{tpu_custom_call.1} parent=1 // pred_fallthru
      _
    // Predicated region
    $region6: #{tpu_custom_call.1} parent=1 // pred_check
      _
    $region7: #{tpu_custom_call.1} parent=1 // pred_check_branch
      %30 = sbr.rel (0) target = $region9
    $region8: #{tpu_custom_call.1} parent=1 // pred_region
      %32 = vsyncadd [#allocation6], 0
      %s34 = sshll.u32 %s1, 4
      %s35 = int_to_ptr.hbm [resolvable:$true] %s34
      %s36 = sshll.u32 [#allocation5], 4
      %s37 = int_to_ptr.vmem [resolvable:$true] %s36
      %39 = dma.hbm_to_vmem [thread:$0]  %s35, 128, %s37, [#allocation6]
    $region9: #{tpu_custom_call.1} parent=1 // pred_fallthru
      _
    // Predicated region
    $region10: #{tpu_custom_call.1} parent=1 // pred_check
      _
    $region11: #{tpu_custom_call.1} parent=1 // pred_check_branch
      %41 = sbr.rel (0) target = $region13
    $region12: #{tpu_custom_call.1} parent=1 // pred_region
      %43 = vsyncadd [#allocation6], 0
      %s45 = sshll.u32 %s2, 4
      %s46 = int_to_ptr.hbm [resolvable:$true] %s45
      %s47 = sshll.u32 [#allocation7], 4
      %s48 = int_to_ptr.vmem [resolvable:$true] %s47
      %50 = dma.hbm_to_vmem [thread:$0]  %s46, 128, %s48, [#allocation6]
    $region13: #{tpu_custom_call.1} parent=1 // pred_fallthru
      _
    // Predicated region
    $region14: #{tpu_custom_call.1} parent=1 // pred_check
      _
    $region15: #{tpu_custom_call.1} parent=1 // pred_check_branch
      %52 = sbr.rel (0) target = $region17
    $region16: #{tpu_custom_call.1} parent=1 // pred_region
      %54 = vsyncadd [#allocation9], 0
      %s55 = sshll.u32 %s3, 4
      %s56 = int_to_ptr.hbm [resolvable:$true] %s55
      %s57 = sshll.u32 [#allocation8], 4
      %s58 = int_to_ptr.vmem [resolvable:$true] %s57
      %63 = dma.hbm_to_vmem [thread:$0]  %s56, 1024, %s58, [#allocation9], 512, 512, 32
    $region17: #{tpu_custom_call.1} parent=1 // pred_fallthru
      _
    // Predicated region
    $region18: #{tpu_custom_call.1} parent=1 // pred_check
      _
    $region19: #{tpu_custom_call.1} parent=1 // pred_check_branch
      %65 = sbr.rel (0) target = $region21
    $region20: #{tpu_custom_call.1} parent=1 // pred_region
      %67 = vsyncadd [#allocation9], 0
      %s68 = sshll.u32 %s4, 4
      %s69 = int_to_ptr.hbm [resolvable:$true] %s68
      %s70 = sshll.u32 [#allocation10], 4
      %s71 = int_to_ptr.vmem [resolvable:$true] %s70
      %76 = dma.hbm_to_vmem [thread:$0]  %s69, 8192, %s71, [#allocation9], 512, 512, 32
    $region21: #{tpu_custom_call.1} parent=1 // pred_fallthru
      _
    // Predicated region
    $region22: #{tpu_custom_call.1} parent=1 // pred_check
      _
    $region23: #{tpu_custom_call.1} parent=1 // pred_check_branch
      %78 = sbr.rel (0) target = $region25
    $region24: #{tpu_custom_call.1} parent=1 // pred_region
      _
    $region25: #{tpu_custom_call.1} parent=1 // pred_fallthru
      _
    // Predicated region
    $region26: #{tpu_custom_call.1} parent=1 // pred_check
      _
    $region27: #{tpu_custom_call.1} parent=1 // pred_check_branch
      %80 = sbr.rel (0) target = $region29
    $region28: #{tpu_custom_call.1} parent=1 // pred_region
      %82 = dma.done [#allocation3], 128
    $region29: #{tpu_custom_call.1} parent=1 // pred_fallthru
      _
    // Predicated region
    $region30: #{tpu_custom_call.1} parent=1 // pred_check
      _
    $region31: #{tpu_custom_call.1} parent=1 // pred_check_branch
      %84 = sbr.rel (0) target = $region33
    $region32: #{tpu_custom_call.1} parent=1 // pred_region
      %86 = dma.done [#allocation6], 128
    $region33: #{tpu_custom_call.1} parent=1 // pred_fallthru
      _
    // Predicated region
    $region34: #{tpu_custom_call.1} parent=1 // pred_check
      _
    $region35: #{tpu_custom_call.1} parent=1 // pred_check_branch
      %88 = sbr.rel (0) target = $region37
    $region36: #{tpu_custom_call.1} parent=1 // pred_region
      %90 = dma.done [#allocation6], 128
    $region37: #{tpu_custom_call.1} parent=1 // pred_fallthru
      _
    // Predicated region
    $region38: #{tpu_custom_call.1} parent=1 // pred_check
      _
    $region39: #{tpu_custom_call.1} parent=1 // pred_check_branch
      %92 = sbr.rel (0) target = $region41
    $region40: #{tpu_custom_call.1} parent=1 // pred_region
      %94 = dma.done [#allocation9], 1024
    $region41: #{tpu_custom_call.1} parent=1 // pred_fallthru
      _
    // Predicated region
    $region42: #{tpu_custom_call.1} parent=1 // pred_check
      _
    $region43: #{tpu_custom_call.1} parent=1 // pred_check_branch
      %96 = sbr.rel (0) target = $region45
    $region44: #{tpu_custom_call.1} parent=1 // pred_region
      %98 = dma.done [#allocation9], 8192
    $region45: #{tpu_custom_call.1} parent=1 // pred_fallthru
      _
    %v99 = vld [vmem:[#allocation2] sm:$0xff]
    %v100 = vld [vmem:[#allocation8] sm:$0xff]
    %v101 = vld [vmem:[#allocation8 + $0x8] sm:$0xff]
    %v102 = vld [vmem:[#allocation8 + $0x10] sm:$0xff]
    %v103 = vld [vmem:[#allocation8 + $0x18] sm:$0xff]
    %v104 = vld [vmem:[#allocation8 + $0x20] sm:$0xff]
    %v105 = vld [vmem:[#allocation8 + $0x28] sm:$0xff]
    %v106 = vld [vmem:[#allocation8 + $0x30] sm:$0xff]
    %v107 = vld [vmem:[#allocation8 + $0x38] sm:$0xff]
    %v108 = vld [vmem:[#allocation5] sm:$0xff]
    %v109 = vld [vmem:[#allocation10] sm:$0xff]
    %v110 = vld [vmem:[#allocation10 + $0x8] sm:$0xff]
    %v111 = vld [vmem:[#allocation10 + $0x10] sm:$0xff]
    %v112 = vld [vmem:[#allocation10 + $0x18] sm:$0xff]
    %v113 = vld [vmem:[#allocation10 + $0x20] sm:$0xff]
    %v114 = vld [vmem:[#allocation10 + $0x28] sm:$0xff]
    %v115 = vld [vmem:[#allocation10 + $0x30] sm:$0xff]
    %v116 = vld [vmem:[#allocation10 + $0x38] sm:$0xff]
    %v117 = vld [vmem:[#allocation10 + $0x40] sm:$0xff]
    %v118 = vld [vmem:[#allocation10 + $0x48] sm:$0xff]
    %v119 = vld [vmem:[#allocation10 + $0x50] sm:$0xff]
    %v120 = vld [vmem:[#allocation10 + $0x58] sm:$0xff]
    %v121 = vld [vmem:[#allocation10 + $0x60] sm:$0xff]
    %v122 = vld [vmem:[#allocation10 + $0x68] sm:$0xff]
    %v123 = vld [vmem:[#allocation10 + $0x70] sm:$0xff]
    %v124 = vld [vmem:[#allocation10 + $0x78] sm:$0xff]
    %v125 = vld [vmem:[#allocation10 + $0x80] sm:$0xff]
    %v126 = vld [vmem:[#allocation10 + $0x88] sm:$0xff]
    %v127 = vld [vmem:[#allocation10 + $0x90] sm:$0xff]
    %v128 = vld [vmem:[#allocation10 + $0x98] sm:$0xff]
    %v129 = vld [vmem:[#allocation10 + $0xa0] sm:$0xff]
    %v130 = vld [vmem:[#allocation10 + $0xa8] sm:$0xff]
    %v131 = vld [vmem:[#allocation10 + $0xb0] sm:$0xff]
    %v132 = vld [vmem:[#allocation10 + $0xb8] sm:$0xff]
    %v133 = vld [vmem:[#allocation10 + $0xc0] sm:$0xff]
    %v134 = vld [vmem:[#allocation10 + $0xc8] sm:$0xff]
    %v135 = vld [vmem:[#allocation10 + $0xd0] sm:$0xff]
    %v136 = vld [vmem:[#allocation10 + $0xd8] sm:$0xff]
    %v137 = vld [vmem:[#allocation10 + $0xe0] sm:$0xff]
    %v138 = vld [vmem:[#allocation10 + $0xe8] sm:$0xff]
    %v139 = vld [vmem:[#allocation10 + $0xf0] sm:$0xff]
    %v140 = vld [vmem:[#allocation10 + $0xf8] sm:$0xff]
    %v141 = vld [vmem:[#allocation10 + $0x100] sm:$0xff]
    %v142 = vld [vmem:[#allocation10 + $0x108] sm:$0xff]
    %v143 = vld [vmem:[#allocation10 + $0x110] sm:$0xff]
    %v144 = vld [vmem:[#allocation10 + $0x118] sm:$0xff]
    %v145 = vld [vmem:[#allocation10 + $0x120] sm:$0xff]
    %v146 = vld [vmem:[#allocation10 + $0x128] sm:$0xff]
    %v147 = vld [vmem:[#allocation10 + $0x130] sm:$0xff]
    %v148 = vld [vmem:[#allocation10 + $0x138] sm:$0xff]
    %v149 = vld [vmem:[#allocation10 + $0x140] sm:$0xff]
    %v150 = vld [vmem:[#allocation10 + $0x148] sm:$0xff]
    %v151 = vld [vmem:[#allocation10 + $0x150] sm:$0xff]
    %v152 = vld [vmem:[#allocation10 + $0x158] sm:$0xff]
    %v153 = vld [vmem:[#allocation10 + $0x160] sm:$0xff]
    %v154 = vld [vmem:[#allocation10 + $0x168] sm:$0xff]
    %v155 = vld [vmem:[#allocation10 + $0x170] sm:$0xff]
    %v156 = vld [vmem:[#allocation10 + $0x178] sm:$0xff]
    %v157 = vld [vmem:[#allocation10 + $0x180] sm:$0xff]
    %v158 = vld [vmem:[#allocation10 + $0x188] sm:$0xff]
    %v159 = vld [vmem:[#allocation10 + $0x190] sm:$0xff]
    %v160 = vld [vmem:[#allocation10 + $0x198] sm:$0xff]
    %v161 = vld [vmem:[#allocation10 + $0x1a0] sm:$0xff]
    %v162 = vld [vmem:[#allocation10 + $0x1a8] sm:$0xff]
    %v163 = vld [vmem:[#allocation10 + $0x1b0] sm:$0xff]
    %v164 = vld [vmem:[#allocation10 + $0x1b8] sm:$0xff]
    %v165 = vld [vmem:[#allocation10 + $0x1c0] sm:$0xff]
    %v166 = vld [vmem:[#allocation10 + $0x1c8] sm:$0xff]
    %v167 = vld [vmem:[#allocation10 + $0x1d0] sm:$0xff]
    %v168 = vld [vmem:[#allocation10 + $0x1d8] sm:$0xff]
    %v169 = vld [vmem:[#allocation10 + $0x1e0] sm:$0xff]
    %v170 = vld [vmem:[#allocation10 + $0x1e8] sm:$0xff]
    %v171 = vld [vmem:[#allocation10 + $0x1f0] sm:$0xff]
    %v172 = vld [vmem:[#allocation10 + $0x1f8] sm:$0xff]
    %173 = vmatpush.msra.mxu0 %v169
    %174 = vmatpush.msra.mxu0 %v165
    %175 = vmatpush.msra.mxu0 %v161
    %176 = vmatpush.msra.mxu0 %v157
    %177 = vmatpush.msra.mxu0 %v153
    %178 = vmatpush.msra.mxu0 %v149
    %179 = vmatpush.msra.mxu0 %v145
    %180 = vmatpush.msra.mxu0 %v141
    %181 = vmatpush.msra.mxu0 %v137
    %182 = vmatpush.msra.mxu0 %v133
    %183 = vmatpush.msra.mxu0 %v129
    %184 = vmatpush.msra.mxu0 %v125
    %185 = vmatpush.msra.mxu0 %v121
    %186 = vmatpush.msra.mxu0 %v117
    %187 = vmatpush.msra.mxu0 %v113
    %188 = vmatpush.msra.mxu0 %v109
    %189 = vmatmul.f32.gmra.mxu0 %v108
    %v190 = vpop.f32.mrf.mxu0
    %v191 = vadd.f32 0.0, %v190
    %192 = vdwg.mxu0
    %193 = vmatpush.msra.mxu0 %v170
    %194 = vmatpush.msra.mxu0 %v166
    %195 = vmatpush.msra.mxu0 %v162
    %196 = vmatpush.msra.mxu0 %v158
    %197 = vmatpush.msra.mxu0 %v154
    %198 = vmatpush.msra.mxu0 %v150
    %199 = vmatpush.msra.mxu0 %v146
    %200 = vmatpush.msra.mxu0 %v142
    %201 = vmatpush.msra.mxu0 %v138
    %202 = vmatpush.msra.mxu0 %v134
    %203 = vmatpush.msra.mxu0 %v130
    %204 = vmatpush.msra.mxu0 %v126
    %205 = vmatpush.msra.mxu0 %v122
    %206 = vmatpush.msra.mxu0 %v118
    %207 = vmatpush.msra.mxu0 %v114
    %208 = vmatpush.msra.mxu0 %v110
    %209 = vmatmul.f32.gmra.mxu0 %v108
    %v210 = vpop.f32.mrf.mxu0
    %v211 = vadd.f32 0.0, %v210
    %212 = vdwg.mxu0
    %213 = vmatpush.msra.mxu0 %v171
    %214 = vmatpush.msra.mxu0 %v167
    %215 = vmatpush.msra.mxu0 %v163
    %216 = vmatpush.msra.mxu0 %v159
    %217 = vmatpush.msra.mxu0 %v155
    %218 = vmatpush.msra.mxu0 %v151
    %219 = vmatpush.msra.mxu0 %v147
    %220 = vmatpush.msra.mxu0 %v143
    %221 = vmatpush.msra.mxu0 %v139
    %222 = vmatpush.msra.mxu0 %v135
    %223 = vmatpush.msra.mxu0 %v131
    %224 = vmatpush.msra.mxu0 %v127
    %225 = vmatpush.msra.mxu0 %v123
    %226 = vmatpush.msra.mxu0 %v119
    %227 = vmatpush.msra.mxu0 %v115
    %228 = vmatpush.msra.mxu0 %v111
    %229 = vmatmul.f32.gmra.mxu0 %v108
    %v230 = vpop.f32.mrf.mxu0
    %v231 = vadd.f32 0.0, %v230
    %232 = vdwg.mxu0
    %233 = vmatpush.msra.mxu0 %v172
    %234 = vmatpush.msra.mxu0 %v168
    %235 = vmatpush.msra.mxu0 %v164
    %236 = vmatpush.msra.mxu0 %v160
    %237 = vmatpush.msra.mxu0 %v156
    %238 = vmatpush.msra.mxu0 %v152
    %239 = vmatpush.msra.mxu0 %v148
    %240 = vmatpush.msra.mxu0 %v144
    %241 = vmatpush.msra.mxu0 %v140
    %242 = vmatpush.msra.mxu0 %v136
    %243 = vmatpush.msra.mxu0 %v132
    %244 = vmatpush.msra.mxu0 %v128
    %245 = vmatpush.msra.mxu0 %v124
    %246 = vmatpush.msra.mxu0 %v120
    %247 = vmatpush.msra.mxu0 %v116
    %248 = vmatpush.msra.mxu0 %v112
    %249 = vmatmul.f32.gmra.mxu0 %v108
    %v250 = vpop.f32.mrf.mxu0
    %v251 = vadd.f32 0.0, %v250
    %252 = vdwg.mxu0
    %vm253 = vcmask 130048
    %v255 = vsel %vm253, %v99, 0
    %257 = vmatpush.msra.mxu0 0.0
    %258 = vmatpush.msra.mxu0 0.0
    %259 = vmatpush.msra.mxu0 0.0
    %260 = vmatpush.msra.mxu0 0.0
    %261 = vmatpush.msra.mxu0 0.0
    %262 = vmatpush.msra.mxu0 0.0
    %263 = vmatpush.msra.mxu0 0.0
    %264 = vmatpush.msra.mxu0 0.0
    %265 = vmatpush.msra.mxu0 0.0
    %266 = vmatpush.msra.mxu0 0.0
    %267 = vmatpush.msra.mxu0 0.0
    %268 = vmatpush.msra.mxu0 0.0
    %269 = vmatpush.msra.mxu0 0.0
    %270 = vmatpush.msra.mxu0 0.0
    %271 = vmatpush.msra.mxu0 %v104
    %272 = vmatpush.msra.mxu0 %v100
    %273 = vmatmul.f32.gmra.mxu0 %v255
    %v274 = vpop.f32.mrf.mxu0
    %v275 = vadd.f32 %v191, %v274
    %276 = vdwg.mxu0
    %277 = vmatpush.msra.mxu0 0.0
    %278 = vmatpush.msra.mxu0 0.0
    %279 = vmatpush.msra.mxu0 0.0
    %280 = vmatpush.msra.mxu0 0.0
    %281 = vmatpush.msra.mxu0 0.0
    %282 = vmatpush.msra.mxu0 0.0
    %283 = vmatpush.msra.mxu0 0.0
    %284 = vmatpush.msra.mxu0 0.0
    %285 = vmatpush.msra.mxu0 0.0
    %286 = vmatpush.msra.mxu0 0.0
    %287 = vmatpush.msra.mxu0 0.0
    %288 = vmatpush.msra.mxu0 0.0
    %289 = vmatpush.msra.mxu0 0.0
    %290 = vmatpush.msra.mxu0 0.0
    %291 = vmatpush.msra.mxu0 %v105
    %292 = vmatpush.msra.mxu0 %v101
    %293 = vmatmul.f32.gmra.mxu0 %v255
    %v294 = vpop.f32.mrf.mxu0
    %v295 = vadd.f32 %v211, %v294
    %296 = vdwg.mxu0
    %297 = vmatpush.msra.mxu0 0.0
    %298 = vmatpush.msra.mxu0 0.0
    %299 = vmatpush.msra.mxu0 0.0
    %300 = vmatpush.msra.mxu0 0.0
    %301 = vmatpush.msra.mxu0 0.0
    %302 = vmatpush.msra.mxu0 0.0
    %303 = vmatpush.msra.mxu0 0.0
    %304 = vmatpush.msra.mxu0 0.0
    %305 = vmatpush.msra.mxu0 0.0
    %306 = vmatpush.msra.mxu0 0.0
    %307 = vmatpush.msra.mxu0 0.0
    %308 = vmatpush.msra.mxu0 0.0
    %309 = vmatpush.msra.mxu0 0.0
    %310 = vmatpush.msra.mxu0 0.0
    %311 = vmatpush.msra.mxu0 %v106
    %312 = vmatpush.msra.mxu0 %v102
    %313 = vmatmul.f32.gmra.mxu0 %v255
    %v314 = vpop.f32.mrf.mxu0
    %v315 = vadd.f32 %v231, %v314
    %316 = vdwg.mxu0
    %317 = vmatpush.msra.mxu0 0.0
    %318 = vmatpush.msra.mxu0 0.0
    %319 = vmatpush.msra.mxu0 0.0
    %320 = vmatpush.msra.mxu0 0.0
    %321 = vmatpush.msra.mxu0 0.0
    %322 = vmatpush.msra.mxu0 0.0
    %323 = vmatpush.msra.mxu0 0.0
    %324 = vmatpush.msra.mxu0 0.0
    %325 = vmatpush.msra.mxu0 0.0
    %326 = vmatpush.msra.mxu0 0.0
    %327 = vmatpush.msra.mxu0 0.0
    %328 = vmatpush.msra.mxu0 0.0
    %329 = vmatpush.msra.mxu0 0.0
    %330 = vmatpush.msra.mxu0 0.0
    %331 = vmatpush.msra.mxu0 %v107
    %332 = vmatpush.msra.mxu0 %v103
    %333 = vmatmul.f32.gmra.mxu0 %v255
    %v334 = vpop.f32.mrf.mxu0
    %v335 = vadd.f32 %v251, %v334
    %336 = vdwg.mxu0
    %v337 = vld [vmem:[%s5] sm:$0xf]
    %v339 = vperm.slane %v337, 0
    %v340 = vperm.slane %v337, 1
    %v341 = vperm.slane %v337, 2
    %v342 = vperm.slane %v337, 3
    %v347 = vadd.f32 %v275, %v339
    %v348 = vadd.f32 %v295, %v340
    %v349 = vadd.f32 %v315, %v341
    %v350 = vadd.f32 %v335, %v342
    %v351 = vld [vmem:[#allocation7] sm:$0xff]
    %v352 = vmul.f32 %v347, 0.5
    %v353 = vtanh.pop %v352
    %v354 = vmul.f32 %v353, 0.5
    %v355 = vadd.f32 %v354, 0.5
    %v356 = vmul.f32 %v348, 0.5
    %v357 = vtanh.pop %v356
    %v358 = vmul.f32 %v357, 0.5
    %v359 = vadd.f32 %v358, 0.5
    %v360 = vtanh.pop %v349
    %v361 = vmul.f32 %v350, 0.5
    %v362 = vtanh.pop %v361
    %v363 = vmul.f32 %v362, 0.5
    %v364 = vadd.f32 %v363, 0.5
    %v365 = vmul.f32 %v351, %v355
    %v366 = vmul.f32 %v359, %v360
    %v367 = vadd.f32 %v365, %v366
    %368 = vst [vmem:[#allocation12] sm:$0xff] %v367
    %v369 = vtanh.pop %v351
    %v370 = vmul.f32 %v369, %v364
    %371 = vst [vmem:[#allocation11] sm:$0xff] %v370
    // Predicated region
    $region46: #{tpu_custom_call.1} parent=1 // pred_check
      _
    $region47: #{tpu_custom_call.1} parent=1 // pred_check_branch
      %373 = sbr.rel (0) target = $region49
    $region48: #{tpu_custom_call.1} parent=1 // pred_region
      %375 = vsyncadd [#allocation4], 0
      %s377 = sshll.u32 [#allocation11], 4
      %s378 = int_to_ptr.vmem [resolvable:$true] %s377
      %s379 = sshll.u32 %s6, 4
      %s380 = int_to_ptr.hbm [resolvable:$true] %s379
      %382 = dma.vmem_to_hbm [thread:$0]  %s378, 128, %s380, [#allocation4]
    $region49: #{tpu_custom_call.1} parent=1 // pred_fallthru
      _
    // Predicated region
    $region50: #{tpu_custom_call.1} parent=1 // pred_check
      _
    $region51: #{tpu_custom_call.1} parent=1 // pred_check_branch
      %384 = sbr.rel (0) target = $region53
    $region52: #{tpu_custom_call.1} parent=1 // pred_region
      %386 = vsyncadd [#allocation13], 0
      %s388 = sshll.u32 [#allocation12], 4
      %s389 = int_to_ptr.vmem [resolvable:$true] %s388
      %s390 = sshll.u32 %s7, 4
      %s391 = int_to_ptr.hbm [resolvable:$true] %s390
      %393 = dma.vmem_to_hbm [thread:$0]  %s389, 128, %s391, [#allocation13]
    $region53: #{tpu_custom_call.1} parent=1 // pred_fallthru
      _
    // Predicated region
    $region54: #{tpu_custom_call.1} parent=1 // pred_check
      _
    $region55: #{tpu_custom_call.1} parent=1 // pred_check_branch
      %395 = sbr.rel (0) target = $region57
    $region56: #{tpu_custom_call.1} parent=1 // pred_region
      %397 = dma.done [#allocation4], 128
    $region57: #{tpu_custom_call.1} parent=1 // pred_fallthru
      _
    // Predicated region
    $region58: #{tpu_custom_call.1} parent=1 // pred_check
      _
    $region59: #{tpu_custom_call.1} parent=1 // pred_check_branch
      %399 = sbr.rel (0) target = $region61
    $region60: #{tpu_custom_call.1} parent=1 // pred_region
      %401 = dma.done [#allocation13], 128
    $region61: #{tpu_custom_call.1} parent=1 // pred_fallthru
      _
    %402 = vsyncpa [#allocation3], 1
    %403 = vsyncpa [#allocation6], 1
    %404 = vsyncpa [#allocation9], 1
    %405 = vsyncpa [#allocation4], 1
    %406 = vsyncpa [#allocation13], 1

</llo_original>
